<compile_context>
chip_gen: v5e
topology: v5e:2x2
jax: 0.10.0
libtpu: 0.0.40
codegen_flags: <defaults>
</compile_context>

<pallas_src>
import math
import jax
import jax.numpy as jnp
from jax.experimental import pallas as pl
from jax.experimental.pallas import tpu as pltpu

# ---------------------------- model sizes (small) ----------------------------
B = 2          # batch
S = 8          # sequence length
H = 32         # hidden size
BS = B * S     # flattened tokens
F = 4 * H      # FFN intermediate (=128)
VOCAB = 50
N_CLS = 2
N_SPAN = 5
N_REL = 5
LN_EPS = 1e-12
F32 = jnp.float32
BF16 = jnp.bfloat16

# packed head-output column layout inside the lane-dense (BS, 128) output slab
C_CLS = 0              # [0, 2)   cls_head
C_SPAN = 2             # [2, 7)   span_head
C_A = 7                # [7, 12)  a_part  (qs @ wr1 + brel, fused)
C_B = 12               # [12, 17) b_part  (ke @ wr2, fused)
OUT_W = 128


# --------------------------------- kernel ------------------------------------
def joint_kernel(x_ref, mb_ref, wqkv_ref, wo_ref, wff1_ref, wff2_ref,
                 whead_ref, b128_ref, b32_ref, out_ref):
    x = x_ref[...]                          # (BS, H)  f32 embeddings
    mb = mb_ref[...]                        # (BS, BS) f32 additive block-diag mask

    b_qkv = b128_ref[0:1, 0:3 * H]          # (1, 3H) [bq/sqrt(H) | bk | bv]
    b_ff1 = b128_ref[1:2, :]                # (1, F)
    b_head = b128_ref[2:3, :]               # (1, 128) packed head biases
    b_o = b32_ref[0:1, :]                   # (1, H)
    b_ff2 = b32_ref[1:2, :]
    g1 = b32_ref[2:3, :]
    be1 = b32_ref[3:4, :]
    g2 = b32_ref[4:5, :]
    be2 = b32_ref[5:6, :]

    def cast(a):                            # bf16 MXU operands, f32 accumulation
        return a.astype(BF16)

    def layernorm(a, g, b):
        # two independent reductions (mean, mean-of-squares) shorten the XLU chain
        mu = jnp.mean(a, axis=-1, keepdims=True)
        mu2 = jnp.mean(a * a, axis=-1, keepdims=True)
        var = mu2 - mu * mu
        return (a - mu) * jax.lax.rsqrt(var + LN_EPS) * g + b

    # ---- fused QKV projection (single MXU push, no wasted lanes)
    qkv = jnp.dot(cast(x), wqkv_ref[...], preferred_element_type=F32) + b_qkv
    q = qkv[:, 0:H]
    k = qkv[:, H:2 * H]
    v = qkv[:, 2 * H:3 * H]

    # ---- block-diagonal (per-batch) self-attention; 1/sqrt(H) folded into wq.
    #      transposed contraction: no explicit k.T (avoids XLU vxpose).
    scores = jax.lax.dot_general(
        cast(q), cast(k), (((1,), (1,)), ((), ())),
        preferred_element_type=F32) + mb                                   # (BS, BS)
    m = jnp.max(scores, axis=-1, keepdims=True)
    p = jnp.exp(scores - m)
    denom = jnp.sum(p, axis=-1, keepdims=True)
    # delayed normalization: PV matmul first, then scale by the EUP reciprocal
    ctx = jnp.dot(cast(p), cast(v), preferred_element_type=F32)            # (BS, H)
    ctx = ctx * pl.reciprocal(denom, approx=True)

    attn_out = jnp.dot(cast(ctx), wo_ref[...], preferred_element_type=F32) + b_o
    x1 = layernorm(x + attn_out, g1, be1)

    # TODO(synk): synthetic encoder uses the tanh-approx GELU; HF BERT uses erf form.
    ff = jax.nn.gelu(jnp.dot(cast(x1), wff1_ref[...],
                             preferred_element_type=F32) + b_ff1)          # (BS, F)
    ff2 = jnp.dot(cast(ff), wff2_ref[...], preferred_element_type=F32) + b_ff2
    h = layernorm(x1 + ff2, g2, be2)                                       # (BS, H)

    # ---- all heads fused into one lane-dense matmul -> packed (BS, 128) slab
    out_ref[...] = (jnp.dot(cast(h), whead_ref[...],
                            preferred_element_type=F32) + b_head)


# ------------------------------ weight packing --------------------------------
def pack_params(p):
    """One-time packing at parameter-load time (NOT in the per-call path)."""
    sc = 1.0 / math.sqrt(H)
    w_qkv = jnp.concatenate(
        [p["wq"] * sc, p["wk"], p["wv"]], axis=1).astype(BF16)             # (H, 3H)
    b_qkv = jnp.concatenate([p["bq"] * sc, p["bk"], p["bv"]], axis=1)      # (1, 3H)
    b_qkv_pad = jnp.zeros((1, OUT_W), F32).at[:, 0:3 * H].set(b_qkv)

    # rel head is linear, so fold the biaffine projections into it:
    #   qs @ wr1 = h @ (wbs @ wr1) + bbs @ wr1 ;  ke @ wr2 likewise.
    w_a = p["wbs"] @ p["wr1"]
    w_b = p["wbe"] @ p["wr2"]
    b_a = p["bbs"] @ p["wr1"] + p["brel"]
    b_b = p["bbe"] @ p["wr2"]

    w_head = jnp.zeros((H, OUT_W), F32)
    w_head = (w_head.at[:, C_CLS:C_CLS + N_CLS].set(p["wcls"])
                    .at[:, C_SPAN:C_SPAN + N_SPAN].set(p["wspan"])
                    .at[:, C_A:C_A + N_REL].set(w_a)
                    .at[:, C_B:C_B + N_REL].set(w_b)).astype(BF16)
    b_head = jnp.zeros((1, OUT_W), F32)
    b_head = (b_head.at[:, C_CLS:C_CLS + N_CLS].set(p["bcls"])
                    .at[:, C_SPAN:C_SPAN + N_SPAN].set(p["bspan"])
                    .at[:, C_A:C_A + N_REL].set(b_a)
                    .at[:, C_B:C_B + N_REL].set(b_b))

    b128 = jnp.concatenate([b_qkv_pad, p["bf1"], b_head], axis=0)          # (3, 128)
    b32 = jnp.concatenate(
        [p["bo"], p["bf2"], p["g1"], p["be1"], p["g2"], p["be2"]], axis=0)  # (6, H)

    return {
        "tok_emb": p["tok_emb"], "pos_emb": p["pos_emb"],
        "w_qkv": w_qkv, "w_o": p["wo"].astype(BF16),
        "w_ff1": p["w1"].astype(BF16), "w_ff2": p["w2"].astype(BF16),
        "w_head": w_head, "b128": b128, "b32": b32,
    }


# -------------------------------- wrapper ------------------------------------
@jax.jit
def joint_causal_ie(ids, attn, pk):
    """ids, attn: (B, S) int32. pk: pre-packed params.
    Returns (logits_cls, logits_span, logits_rel)."""
    # glue (XLA): embedding lookup + block-diagonal attention-mask bias
    x_emb = pk["tok_emb"][ids] + pk["pos_emb"][None, :, :]                 # (B,S,H)
    x_flat = x_emb.reshape(BS, H).astype(F32)

    same_batch = jnp.eye(B, dtype=F32)                                     # (B,B)
    valid = attn.astype(F32)                                               # (B,S)
    allowed = same_batch[:, None, :, None] * valid[None, None, :, :]       # (B,1,B,S)
    allowed = jnp.broadcast_to(allowed, (B, S, B, S))                      # (B,S,B,S)
    mask_bias = ((1.0 - allowed) * -1e9).reshape(BS, BS)                   # (BS,BS)

    vmem = pl.BlockSpec(memory_space=pltpu.MemorySpace.VMEM)
    out = pl.pallas_call(
        joint_kernel,
        out_shape=jax.ShapeDtypeStruct((BS, OUT_W), F32),
        in_specs=[vmem] * 9,
        out_specs=vmem,
    )(x_flat, mask_bias, pk["w_qkv"], pk["w_o"], pk["w_ff1"], pk["w_ff2"],
      pk["w_head"], pk["b128"], pk["b32"])

    head = out.reshape(B, S, OUT_W)
    logits_cls = head[:, 0, C_CLS:C_CLS + N_CLS]                           # (B, 2)
    logits_span = head[:, :, C_SPAN:C_SPAN + N_SPAN]                       # (B, S, 5)
    a_part = head[:, :, C_A:C_A + N_REL]                                   # (B, S, 5)
    b_part = head[:, :, C_B:C_B + N_REL]                                   # (B, S, 5)
    # rel outer-broadcast done in XLA (kernel output stays lane-dense)
    logits_rel = a_part[:, :, None, :] + b_part[:, None, :, :]             # (B,S,S,5)
    return logits_cls, logits_span, logits_rel


# ------------------------- deterministic parameters ---------------------------
def init_params(key):
    ks = iter(jax.random.split(key, 64))

    def w(shape, scale=0.02):
        return (jax.random.normal(next(ks), shape, dtype=F32) * scale).astype(F32)

    p = {
        # embeddings (synthetic encoder)
        "tok_emb": w((VOCAB, H)),
        "pos_emb": w((S, H)),
        # encoder layer
        "wq": w((H, H)), "bq": jnp.zeros((1, H), F32),
        "wk": w((H, H)), "bk": jnp.zeros((1, H), F32),
        "wv": w((H, H)), "bv": jnp.zeros((1, H), F32),
        "wo": w((H, H)), "bo": jnp.zeros((1, H), F32),
        "g1": jnp.ones((1, H), F32), "be1": jnp.zeros((1, H), F32),
        "w1": w((H, F)), "bf1": jnp.zeros((1, F), F32),
        "w2": w((F, H)), "bf2": jnp.zeros((1, H), F32),
        "g2": jnp.ones((1, H), F32), "be2": jnp.zeros((1, H), F32),
        # heads (Linear weights stored as (in, out) == PyTorch weight.T)
        "wcls": w((H, N_CLS)), "bcls": jnp.zeros((1, N_CLS), F32),
        "wspan": w((H, N_SPAN)), "bspan": jnp.zeros((1, N_SPAN), F32),
        "wbs": w((H, H)), "bbs": jnp.zeros((1, H), F32),
        "wbe": w((H, H)), "bbe": jnp.zeros((1, H), F32),
        # rel_out: Linear(2H, 5) split into the qs-half and ke-half of weight.T
        "wr1": w((H, N_REL)), "wr2": w((H, N_REL)),
        "brel": jnp.zeros((1, N_REL), F32),
    }
    return p


# ----------------------------------- main -------------------------------------
if __name__ == "__main__":
    key = jax.random.PRNGKey(0)
    kp, kid = jax.random.split(key)
    params = init_params(kp)

    # one-time packing (hoisted out of the per-call path)
    packed = jax.tree_util.tree_map(jnp.asarray, pack_params(params))

    ids = jax.random.randint(kid, (B, S), 0, VOCAB, dtype=jnp.int32)
    attn = jnp.array(
        [[1, 1, 1, 1, 1, 1, 1, 1],
         [1, 1, 1, 1, 1, 0, 0, 0]], dtype=jnp.int32)

    logits_cls, logits_span, logits_rel = joint_causal_ie(ids, attn, packed)
    jax.block_until_ready((logits_cls, logits_span, logits_rel))

    assert logits_cls.shape == (B, N_CLS)
    assert logits_span.shape == (B, S, N_SPAN)
    assert logits_rel.shape == (B, S, S, N_REL)
    print("KERNEL_OK")
</pallas_src>

<mosaic_0001>
module attributes {stable_mosaic.version = 11 : i64} {
  func.func @joint_kernel(%arg0: memref<16x32xf32, #tpu.memory_space<vmem>>, %arg1: memref<16x16xf32, #tpu.memory_space<vmem>>, %arg2: memref<32x96xbf16, #tpu.memory_space<vmem>>, %arg3: memref<32x32xbf16, #tpu.memory_space<vmem>>, %arg4: memref<32x128xbf16, #tpu.memory_space<vmem>>, %arg5: memref<128x32xbf16, #tpu.memory_space<vmem>>, %arg6: memref<32x128xbf16, #tpu.memory_space<vmem>>, %arg7: memref<3x128xf32, #tpu.memory_space<vmem>>, %arg8: memref<6x32xf32, #tpu.memory_space<vmem>>, %arg9: memref<16x128xf32, #tpu.memory_space<vmem>>) attributes {dimension_semantics = [], scalar_prefetch = 0 : i64, scratch_operands = 0 : i64, tpu.core_type = #tpu.core_type<tc>} {
    %c0 = arith.constant 0 : index
    %c0_0 = arith.constant 0 : index
    %0 = vector.load %arg0[%c0, %c0_0] : memref<16x32xf32, #tpu.memory_space<vmem>>, vector<16x32xf32>
    %c0_1 = arith.constant 0 : index
    %c0_2 = arith.constant 0 : index
    %1 = vector.load %arg1[%c0_1, %c0_2] : memref<16x16xf32, #tpu.memory_space<vmem>>, vector<16x16xf32>
    %c0_3 = arith.constant 0 : index
    %c0_4 = arith.constant 0 : index
    %2 = vector.load %arg7[%c0_3, %c0_4] : memref<3x128xf32, #tpu.memory_space<vmem>>, vector<1x96xf32>
    %c1 = arith.constant 1 : index
    %c0_5 = arith.constant 0 : index
    %3 = vector.load %arg7[%c1, %c0_5] : memref<3x128xf32, #tpu.memory_space<vmem>>, vector<1x128xf32>
    %c2 = arith.constant 2 : index
    %c0_6 = arith.constant 0 : index
    %4 = vector.load %arg7[%c2, %c0_6] : memref<3x128xf32, #tpu.memory_space<vmem>>, vector<1x128xf32>
    %c0_7 = arith.constant 0 : index
    %c0_8 = arith.constant 0 : index
    %5 = vector.load %arg8[%c0_7, %c0_8] : memref<6x32xf32, #tpu.memory_space<vmem>>, vector<1x32xf32>
    %c1_9 = arith.constant 1 : index
    %c0_10 = arith.constant 0 : index
    %6 = vector.load %arg8[%c1_9, %c0_10] : memref<6x32xf32, #tpu.memory_space<vmem>>, vector<1x32xf32>
    %c2_11 = arith.constant 2 : index
    %c0_12 = arith.constant 0 : index
    %7 = vector.load %arg8[%c2_11, %c0_12] : memref<6x32xf32, #tpu.memory_space<vmem>>, vector<1x32xf32>
    %c3 = arith.constant 3 : index
    %c0_13 = arith.constant 0 : index
    %8 = vector.load %arg8[%c3, %c0_13] : memref<6x32xf32, #tpu.memory_space<vmem>>, vector<1x32xf32>
    %c4 = arith.constant 4 : index
    %c0_14 = arith.constant 0 : index
    %9 = vector.load %arg8[%c4, %c0_14] : memref<6x32xf32, #tpu.memory_space<vmem>>, vector<1x32xf32>
    %c5 = arith.constant 5 : index
    %c0_15 = arith.constant 0 : index
    %10 = vector.load %arg8[%c5, %c0_15] : memref<6x32xf32, #tpu.memory_space<vmem>>, vector<1x32xf32>
    %11 = arith.truncf %0 : vector<16x32xf32> to vector<16x32xbf16>
    %c0_16 = arith.constant 0 : index
    %c0_17 = arith.constant 0 : index
    %12 = vector.load %arg2[%c0_16, %c0_17] : memref<32x96xbf16, #tpu.memory_space<vmem>>, vector<32x96xbf16>
    %cst = arith.constant dense<0.000000e+00> : vector<16x96xf32>
    %13 = tpu.matmul %11, %12, %cst {dimension_numbers = #tpu.dot_dimension_numbers<[1], [0], [0], [1], [0, 0, 1, 1], [], []>} : vector<16x32xbf16>, vector<32x96xbf16>, vector<16x96xf32> -> vector<16x96xf32>
    %14 = vector.broadcast %2 : vector<1x96xf32> to vector<16x96xf32>
    %15 = arith.addf %13, %14 : vector<16x96xf32>
    %16 = vector.extract_strided_slice %15 {offsets = [0, 0], sizes = [16, 32], strides = [1, 1]} : vector<16x96xf32> to vector<16x32xf32>
    %17 = vector.extract_strided_slice %15 {offsets = [0, 32], sizes = [16, 32], strides = [1, 1]} : vector<16x96xf32> to vector<16x32xf32>
    %18 = vector.extract_strided_slice %15 {offsets = [0, 64], sizes = [16, 32], strides = [1, 1]} : vector<16x96xf32> to vector<16x32xf32>
    %19 = arith.truncf %16 : vector<16x32xf32> to vector<16x32xbf16>
    %20 = arith.truncf %17 : vector<16x32xf32> to vector<16x32xbf16>
    %cst_18 = arith.constant dense<0.000000e+00> : vector<16x16xf32>
    %21 = tpu.matmul %19, %20, %cst_18 {dimension_numbers = #tpu.dot_dimension_numbers<[1], [1], [0], [0], [0, 0, 1, 0], [], []>} : vector<16x32xbf16>, vector<16x32xbf16>, vector<16x16xf32> -> vector<16x16xf32>
    %22 = arith.addf %21, %1 : vector<16x16xf32>
    %cst_19 = arith.constant dense<0xFF800000> : vector<16xf32>
    %23 = vector.multi_reduction <maximumf>, %22, %cst_19 [1] : vector<16x16xf32> to vector<16xf32>
    %24 = vector.shape_cast %23 : vector<16xf32> to vector<16x1xf32>
    %25 = vector.broadcast %24 : vector<16x1xf32> to vector<16x16xf32>
    %26 = arith.subf %22, %25 : vector<16x16xf32>
    %27 = math.exp %26 : vector<16x16xf32>
    %cst_20 = arith.constant dense<0.000000e+00> : vector<16xf32>
    %28 = vector.multi_reduction <add>, %27, %cst_20 [1] : vector<16x16xf32> to vector<16xf32>
    %29 = vector.shape_cast %28 : vector<16xf32> to vector<16x1xf32>
    %30 = arith.truncf %27 : vector<16x16xf32> to vector<16x16xbf16>
    %31 = arith.truncf %18 : vector<16x32xf32> to vector<16x32xbf16>
    %cst_21 = arith.constant dense<0.000000e+00> : vector<16x32xf32>
    %32 = tpu.matmul %30, %31, %cst_21 {dimension_numbers = #tpu.dot_dimension_numbers<[1], [0], [0], [1], [0, 0, 1, 1], [], []>} : vector<16x16xbf16>, vector<16x32xbf16>, vector<16x32xf32> -> vector<16x32xf32>
    %33 = tpu.reciprocal %29 {approx = true} : vector<16x1xf32> -> vector<16x1xf32>
    %34 = vector.broadcast %33 : vector<16x1xf32> to vector<16x32xf32>
    %35 = arith.mulf %32, %34 : vector<16x32xf32>
    %36 = arith.truncf %35 : vector<16x32xf32> to vector<16x32xbf16>
    %c0_22 = arith.constant 0 : index
    %c0_23 = arith.constant 0 : index
    %37 = vector.load %arg3[%c0_22, %c0_23] : memref<32x32xbf16, #tpu.memory_space<vmem>>, vector<32x32xbf16>
    %cst_24 = arith.constant dense<0.000000e+00> : vector<16x32xf32>
    %38 = tpu.matmul %36, %37, %cst_24 {dimension_numbers = #tpu.dot_dimension_numbers<[1], [0], [0], [1], [0, 0, 1, 1], [], []>} : vector<16x32xbf16>, vector<32x32xbf16>, vector<16x32xf32> -> vector<16x32xf32>
    %39 = vector.broadcast %5 : vector<1x32xf32> to vector<16x32xf32>
    %40 = arith.addf %38, %39 : vector<16x32xf32>
    %41 = arith.addf %0, %40 : vector<16x32xf32>
    %cst_25 = arith.constant dense<0.000000e+00> : vector<16xf32>
    %42 = vector.multi_reduction <add>, %41, %cst_25 [1] : vector<16x32xf32> to vector<16xf32>
    %43 = vector.shape_cast %42 : vector<16xf32> to vector<16x1xf32>
    %cst_26 = arith.constant 3.200000e+01 : f32
    %44 = vector.broadcast %cst_26 : f32 to vector<16x1xf32>
    %45 = arith.divf %43, %44 : vector<16x1xf32>
    %46 = arith.mulf %41, %41 : vector<16x32xf32>
    %cst_27 = arith.constant dense<0.000000e+00> : vector<16xf32>
    %47 = vector.multi_reduction <add>, %46, %cst_27 [1] : vector<16x32xf32> to vector<16xf32>
    %48 = vector.shape_cast %47 : vector<16xf32> to vector<16x1xf32>
    %cst_28 = arith.constant 3.200000e+01 : f32
    %49 = vector.broadcast %cst_28 : f32 to vector<16x1xf32>
    %50 = arith.divf %48, %49 : vector<16x1xf32>
    %51 = arith.mulf %45, %45 : vector<16x1xf32>
    %52 = arith.subf %50, %51 : vector<16x1xf32>
    %53 = vector.broadcast %45 : vector<16x1xf32> to vector<16x32xf32>
    %54 = arith.subf %41, %53 : vector<16x32xf32>
    %cst_29 = arith.constant 9.99999996E-13 : f32
    %55 = vector.broadcast %cst_29 : f32 to vector<16x1xf32>
    %56 = arith.addf %52, %55 : vector<16x1xf32>
    %57 = math.rsqrt %56 : vector<16x1xf32>
    %58 = vector.broadcast %57 : vector<16x1xf32> to vector<16x32xf32>
    %59 = arith.mulf %54, %58 : vector<16x32xf32>
    %60 = vector.broadcast %7 : vector<1x32xf32> to vector<16x32xf32>
    %61 = arith.mulf %59, %60 : vector<16x32xf32>
    %62 = vector.broadcast %8 : vector<1x32xf32> to vector<16x32xf32>
    %63 = arith.addf %61, %62 : vector<16x32xf32>
    %64 = arith.truncf %63 : vector<16x32xf32> to vector<16x32xbf16>
    %c0_30 = arith.constant 0 : index
    %c0_31 = arith.constant 0 : index
    %65 = vector.load %arg4[%c0_30, %c0_31] : memref<32x128xbf16, #tpu.memory_space<vmem>>, vector<32x128xbf16>
    %cst_32 = arith.constant dense<0.000000e+00> : vector<16x128xf32>
    %66 = tpu.matmul %64, %65, %cst_32 {dimension_numbers = #tpu.dot_dimension_numbers<[1], [0], [0], [1], [0, 0, 1, 1], [], []>} : vector<16x32xbf16>, vector<32x128xbf16>, vector<16x128xf32> -> vector<16x128xf32>
    %67 = vector.broadcast %3 : vector<1x128xf32> to vector<16x128xf32>
    %68 = arith.addf %66, %67 : vector<16x128xf32>
    %69 = arith.mulf %68, %68 : vector<16x128xf32>
    %70 = arith.mulf %68, %69 : vector<16x128xf32>
    %cst_33 = arith.constant 4.471500e-02 : f32
    %71 = vector.broadcast %cst_33 : f32 to vector<16x128xf32>
    %72 = arith.mulf %71, %70 : vector<16x128xf32>
    %73 = arith.addf %68, %72 : vector<16x128xf32>
    %cst_34 = arith.constant 0.797884583 : f32
    %74 = vector.broadcast %cst_34 : f32 to vector<16x128xf32>
    %75 = arith.mulf %74, %73 : vector<16x128xf32>
    %76 = math.tanh %75 : vector<16x128xf32>
    %cst_35 = arith.constant 1.000000e+00 : f32
    %77 = vector.broadcast %cst_35 : f32 to vector<16x128xf32>
    %78 = arith.addf %77, %76 : vector<16x128xf32>
    %cst_36 = arith.constant 5.000000e-01 : f32
    %79 = vector.broadcast %cst_36 : f32 to vector<16x128xf32>
    %80 = arith.mulf %79, %78 : vector<16x128xf32>
    %81 = arith.mulf %68, %80 : vector<16x128xf32>
    %82 = arith.truncf %81 : vector<16x128xf32> to vector<16x128xbf16>
    %c0_37 = arith.constant 0 : index
    %c0_38 = arith.constant 0 : index
    %83 = vector.load %arg5[%c0_37, %c0_38] : memref<128x32xbf16, #tpu.memory_space<vmem>>, vector<128x32xbf16>
    %cst_39 = arith.constant dense<0.000000e+00> : vector<16x32xf32>
    %84 = tpu.matmul %82, %83, %cst_39 {dimension_numbers = #tpu.dot_dimension_numbers<[1], [0], [0], [1], [0, 0, 1, 1], [], []>} : vector<16x128xbf16>, vector<128x32xbf16>, vector<16x32xf32> -> vector<16x32xf32>
    %85 = vector.broadcast %6 : vector<1x32xf32> to vector<16x32xf32>
    %86 = arith.addf %84, %85 : vector<16x32xf32>
    %87 = arith.addf %63, %86 : vector<16x32xf32>
    %cst_40 = arith.constant dense<0.000000e+00> : vector<16xf32>
    %88 = vector.multi_reduction <add>, %87, %cst_40 [1] : vector<16x32xf32> to vector<16xf32>
    %89 = vector.shape_cast %88 : vector<16xf32> to vector<16x1xf32>
    %cst_41 = arith.constant 3.200000e+01 : f32
    %90 = vector.broadcast %cst_41 : f32 to vector<16x1xf32>
    %91 = arith.divf %89, %90 : vector<16x1xf32>
    %92 = arith.mulf %87, %87 : vector<16x32xf32>
    %cst_42 = arith.constant dense<0.000000e+00> : vector<16xf32>
    %93 = vector.multi_reduction <add>, %92, %cst_42 [1] : vector<16x32xf32> to vector<16xf32>
    %94 = vector.shape_cast %93 : vector<16xf32> to vector<16x1xf32>
    %cst_43 = arith.constant 3.200000e+01 : f32
    %95 = vector.broadcast %cst_43 : f32 to vector<16x1xf32>
    %96 = arith.divf %94, %95 : vector<16x1xf32>
    %97 = arith.mulf %91, %91 : vector<16x1xf32>
    %98 = arith.subf %96, %97 : vector<16x1xf32>
    %99 = vector.broadcast %91 : vector<16x1xf32> to vector<16x32xf32>
    %100 = arith.subf %87, %99 : vector<16x32xf32>
    %cst_44 = arith.constant 9.99999996E-13 : f32
    %101 = vector.broadcast %cst_44 : f32 to vector<16x1xf32>
    %102 = arith.addf %98, %101 : vector<16x1xf32>
    %103 = math.rsqrt %102 : vector<16x1xf32>
    %104 = vector.broadcast %103 : vector<16x1xf32> to vector<16x32xf32>
    %105 = arith.mulf %100, %104 : vector<16x32xf32>
    %106 = vector.broadcast %9 : vector<1x32xf32> to vector<16x32xf32>
    %107 = arith.mulf %105, %106 : vector<16x32xf32>
    %108 = vector.broadcast %10 : vector<1x32xf32> to vector<16x32xf32>
    %109 = arith.addf %107, %108 : vector<16x32xf32>
    %110 = arith.truncf %109 : vector<16x32xf32> to vector<16x32xbf16>
    %c0_45 = arith.constant 0 : index
    %c0_46 = arith.constant 0 : index
    %111 = vector.load %arg6[%c0_45, %c0_46] : memref<32x128xbf16, #tpu.memory_space<vmem>>, vector<32x128xbf16>
    %cst_47 = arith.constant dense<0.000000e+00> : vector<16x128xf32>
    %112 = tpu.matmul %110, %111, %cst_47 {dimension_numbers = #tpu.dot_dimension_numbers<[1], [0], [0], [1], [0, 0, 1, 1], [], []>} : vector<16x32xbf16>, vector<32x128xbf16>, vector<16x128xf32> -> vector<16x128xf32>
    %113 = vector.broadcast %4 : vector<1x128xf32> to vector<16x128xf32>
    %114 = arith.addf %112, %113 : vector<16x128xf32>
    %c0_48 = arith.constant 0 : index
    %c0_49 = arith.constant 0 : index
    %115 = vector.load %arg9[%c0_48, %c0_49] : memref<16x128xf32, #tpu.memory_space<vmem>>, vector<16x128xf32>
    tpu.vector_store %arg9[%c0_48, %c0_49], %114 {strides = array<i32>} : memref<16x128xf32, #tpu.memory_space<vmem>>, vector<16x128xf32>,
    return
  }
}

</mosaic_0001>

<llo_original>
// kernel: joint_causal_ie.1
$region0: #{joint_causal_ie.1}
  #allocation0 [shape = 'u32[]', space=smem, size = 0x4, offset = 0x4, fixed_abs, tag = 'smem constant byte address 0x4 - core index']
  #allocation1 [shape = 'u32[72,128]{1,0:T(1,128)}', space=vmem, size = 0x9000, scoped, tag = 'internal scratch']
  %s0 = inlined_call_operand.vmem [shape: f32[16,32], index: 0, kind: input, shape index: {}]
  %s1 = inlined_call_operand.vmem [shape: f32[16,16], index: 1, kind: input, shape index: {}]
  %s2 = inlined_call_operand.vmem [shape: bf16[32,96], index: 2, kind: input, shape index: {}]
  %s3 = inlined_call_operand.vmem [shape: bf16[32,32], index: 3, kind: input, shape index: {}]
  %s4 = inlined_call_operand.vmem [shape: bf16[32,128], index: 4, kind: input, shape index: {}]
  %s5 = inlined_call_operand.vmem [shape: bf16[128,32], index: 5, kind: input, shape index: {}]
  %s6 = inlined_call_operand.vmem [shape: bf16[32,128], index: 6, kind: input, shape index: {}]
  %s7 = inlined_call_operand.vmem [shape: f32[3,128], index: 7, kind: input, shape index: {}]
  %s8 = inlined_call_operand.vmem [shape: f32[6,32], index: 8, kind: input, shape index: {}]
  %s9 = inlined_call_operand.vmem [shape: f32[16,128], index: 9, kind: output, shape index: {}]
  %s10 = sld [smem:[#allocation0]]
  $region46: #{joint_causal_ie.1} parent=0
    _
  %s12 = ssub.s32 1, %s10
  %s13 = scalar_select 0, %s12, %s10
  // Predicated region
  $region2: #{joint_causal_ie.1} parent=0 // pred_check
    _
  $region3: #{joint_causal_ie.1} parent=0 // pred_check_branch
    %15 = sbr.rel (0) target = $region5
  $region4: #{joint_causal_ie.1} parent=0 // pred_region
    _
  $region5: #{joint_causal_ie.1} parent=0 // pred_fallthru
    _
  // Predicated region
  $region6: #{joint_causal_ie.1} parent=0 // pred_check
    _
  $region7: #{joint_causal_ie.1} parent=0 // pred_check_branch
    %17 = sbr.rel (0) target = $region9
  $region8: #{joint_causal_ie.1} parent=0 // pred_region
    _
  $region9: #{joint_causal_ie.1} parent=0 // pred_fallthru
    _
  // Predicated region
  $region10: #{joint_causal_ie.1} parent=0 // pred_check
    _
  $region11: #{joint_causal_ie.1} parent=0 // pred_check_branch
    %19 = sbr.rel (0) target = $region13
  $region12: #{joint_causal_ie.1} parent=0 // pred_region
    _
  $region13: #{joint_causal_ie.1} parent=0 // pred_fallthru
    _
  // Predicated region
  $region14: #{joint_causal_ie.1} parent=0 // pred_check
    _
  $region15: #{joint_causal_ie.1} parent=0 // pred_check_branch
    %21 = sbr.rel (0) target = $region17
  $region16: #{joint_causal_ie.1} parent=0 // pred_region
    _
  $region17: #{joint_causal_ie.1} parent=0 // pred_fallthru
    _
  // Predicated region
  $region18: #{joint_causal_ie.1} parent=0 // pred_check
    _
  $region19: #{joint_causal_ie.1} parent=0 // pred_check_branch
    %23 = sbr.rel (0) target = $region21
  $region20: #{joint_causal_ie.1} parent=0 // pred_region
    _
  $region21: #{joint_causal_ie.1} parent=0 // pred_fallthru
    _
  // Predicated region
  $region22: #{joint_causal_ie.1} parent=0 // pred_check
    _
  $region23: #{joint_causal_ie.1} parent=0 // pred_check_branch
    %25 = sbr.rel (0) target = $region25
  $region24: #{joint_causal_ie.1} parent=0 // pred_region
    _
  $region25: #{joint_causal_ie.1} parent=0 // pred_fallthru
    _
  // Predicated region
  $region26: #{joint_causal_ie.1} parent=0 // pred_check
    _
  $region27: #{joint_causal_ie.1} parent=0 // pred_check_branch
    %27 = sbr.rel (0) target = $region29
  $region28: #{joint_causal_ie.1} parent=0 // pred_region
    _
  $region29: #{joint_causal_ie.1} parent=0 // pred_fallthru
    _
  // Predicated region
  $region30: #{joint_causal_ie.1} parent=0 // pred_check
    _
  $region31: #{joint_causal_ie.1} parent=0 // pred_check_branch
    %29 = sbr.rel (0) target = $region33
  $region32: #{joint_causal_ie.1} parent=0 // pred_region
    _
  $region33: #{joint_causal_ie.1} parent=0 // pred_fallthru
    _
  // Predicated region
  $region34: #{joint_causal_ie.1} parent=0 // pred_check
    _
  $region35: #{joint_causal_ie.1} parent=0 // pred_check_branch
    %31 = sbr.rel (0) target = $region37
  $region36: #{joint_causal_ie.1} parent=0 // pred_region
    _
  $region37: #{joint_causal_ie.1} parent=0 // pred_fallthru
    _
  %v33 = vld [vmem:[%s0] sm:$0xff]
  %v34 = vld [vmem:[%s0 + $0x8] sm:$0xff]
  %v35 = vld [vmem:[%s1] sm:$0xff]
  %v36 = vld [vmem:[%s1 + $0x8] sm:$0xff]
  %v37 = vld [vmem:[%s7] sm:$0x1]
  %v38 = vld [vmem:[%s7 + $0x1] sm:$0x1]
  %v39 = vld [vmem:[%s7 + $0x2] sm:$0x1]
  %v40 = vld [vmem:[%s8] sm:$0x1]
  %v41 = vld [vmem:[%s8 + $0x1] sm:$0x1]
  %v42 = vld [vmem:[%s8 + $0x2] sm:$0x1]
  %v43 = vld [vmem:[%s8 + $0x3] sm:$0x1]
  %v44 = vld [vmem:[%s8 + $0x4] sm:$0x1]
  %v45 = vld [vmem:[%s8 + $0x5] sm:$0x1]
  %v46 = vpack.c.bf16 %v34, %v33
  %v47 = vld [vmem:[%s2] sm:$0xf]
  %v48 = vld [vmem:[%s2 + $0x4] sm:$0xf]
  %v49 = vld [vmem:[%s2 + $0x8] sm:$0xf]
  %v50 = vld [vmem:[%s2 + $0xc] sm:$0xf]
  %v51 = vperm.slane %v37, 0
  %v56 = vunpack.c.l.b16 %v47
  %v57 = vunpack.c.l.b16 %v48
  %v58 = vunpack.c.l.b16 %v49
  %v59 = vunpack.c.l.b16 %v50
  %v60 = vpack.c.b16 %v57, %v56
  %v61 = vpack.c.b16 %v59, %v58
  %vm64 = vcmask 261120
  %v66 = vsel %vm64, %v46, 0
  %68 = vmatpush.bf16.msra.mxu0 0
  %69 = vmatpush.bf16.msra.mxu0 0
  %70 = vmatpush.bf16.msra.mxu0 0
  %71 = vmatpush.bf16.msra.mxu0 0
  %72 = vmatpush.bf16.msra.mxu0 0
  %73 = vmatpush.bf16.msra.mxu0 0
  %74 = vmatpush.bf16.msra.mxu0 %v61
  %75 = vmatpush.bf16.msra.mxu0 %v60
  %76 = vmatmul.bf16.gmra.mxu0 %v66
  %v77 = vpop.f32.mrf.mxu0
  %v78 = vadd.f32 %v51, %v77
  %v79 = vpop.f32.mrf.mxu0
  %v80 = vadd.f32 %v51, %v79
  %81 = vdwg.mxu0
  %v82 = vpack.c.bf16 %v80, %v78
  %84 = vrot.lane.b32.xlu0 %v82, 96
  %v85 = vpop.permute.xlu0 %84
  %v87 = vsel %vm64, %v82, 0
  %v90 = vsel %vm64, %v85, 0
  %92 = vmatpush.bf16.xpose.msra.mxu0 0
  %93 = vmatpush.bf16.xpose.msra.mxu0 0
  %94 = vmatpush.bf16.xpose.msra.mxu0 0
  %95 = vmatpush.bf16.xpose.msra.mxu0 0
  %96 = vmatpush.bf16.xpose.msra.mxu0 0
  %97 = vmatpush.bf16.xpose.msra.mxu0 0
  %98 = vmatpush.bf16.xpose.msra.mxu0 0
  %99 = vmatpush.bf16.xpose.msra.mxu0 %v90
  %100 = vmatmul.bf16.gmra.mxu0 %v87
  %v101 = vpop.f32.mrf.mxu0
  %v102 = vadd.f32 %v35, %v101
  %v103 = vpop.f32.mrf.mxu0
  %v104 = vadd.f32 %v36, %v103
  %105 = vdwg.mxu0
  %vm106 = vcmask 130048
  %v107 = vsel %vm106, %v102, -inf
  %108 = vmax.xlane.f32.xlu0 %v107
  %v109 = vpop.xlane.xlu0 %108
  %v110 = vsel %vm106, %v104, -inf
  %111 = vmax.xlane.f32.xlu0 %v110
  %v112 = vpop.xlane.xlu0 %111
  %v113 = vsub.f32 %v102, %v109
  %v114 = vsub.f32 %v104, %v112
  %v115 = vmul.f32 %v113, 1.442695
  %v116 = vpow.pop %v115
  %v117 = vmul.f32 %v114, 1.442695
  %v118 = vpow.pop %v117
  %v119 = vsel %vm106, %v116, 0.0
  %120 = vadd.xlane.f32.xlu0 %v119
  %v121 = vpop.xlane.xlu0 %120
  %v122 = vsel %vm106, %v118, 0.0
  %123 = vadd.xlane.f32.xlu0 %v122
  %v124 = vpop.xlane.xlu0 %123
  %v125 = vpack.c.bf16 %v118, %v116
  %126 = vrot.lane.b32.xlu0 %v82, 64
  %v127 = vpop.permute.xlu0 %126
  %v130 = vsel %vm106, %v125, 0
  %132 = vmatpush.bf16.msra.mxu0 0
  %133 = vmatpush.bf16.msra.mxu0 0
  %134 = vmatpush.bf16.msra.mxu0 0
  %135 = vmatpush.bf16.msra.mxu0 0
  %136 = vmatpush.bf16.msra.mxu0 0
  %137 = vmatpush.bf16.msra.mxu0 0
  %138 = vmatpush.bf16.msra.mxu0 0
  %139 = vmatpush.bf16.msra.mxu0 %v127
  %140 = vmatmul.bf16.gmra.mxu0 %v130
  %v141 = vpop.f32.mrf.mxu0
  %v142 = vadd.f32 0.0, %v141
  %v143 = vpop.f32.mrf.mxu0
  %v144 = vadd.f32 0.0, %v143
  %145 = vdwg.mxu0
  %v146 = vrcp.pop %v121
  %v147 = vrcp.pop %v124
  %v148 = vmul.f32 %v142, %v146
  %v149 = vmul.f32 %v144, %v147
  %v150 = vpack.c.bf16 %v149, %v148
  %v151 = vld [vmem:[%s3] sm:$0xf]
  %v152 = vld [vmem:[%s3 + $0x4] sm:$0xf]
  %v153 = vld [vmem:[%s3 + $0x8] sm:$0xf]
  %v154 = vld [vmem:[%s3 + $0xc] sm:$0xf]
  %v155 = vperm.slane %v40, 0
  %v160 = vunpack.c.l.b16 %v151
  %v161 = vunpack.c.l.b16 %v152
  %v162 = vunpack.c.l.b16 %v153
  %v163 = vunpack.c.l.b16 %v154
  %v164 = vpack.c.b16 %v161, %v160
  %v165 = vpack.c.b16 %v163, %v162
  %v169 = vsel %vm64, %v150, 0
  %171 = vmatpush.bf16.msra.mxu0 0
  %172 = vmatpush.bf16.msra.mxu0 0
  %173 = vmatpush.bf16.msra.mxu0 0
  %174 = vmatpush.bf16.msra.mxu0 0
  %175 = vmatpush.bf16.msra.mxu0 0
  %176 = vmatpush.bf16.msra.mxu0 0
  %177 = vmatpush.bf16.msra.mxu0 %v165
  %178 = vmatpush.bf16.msra.mxu0 %v164
  %179 = vmatmul.bf16.gmra.mxu0 %v169
  %v180 = vpop.f32.mrf.mxu0
  %v181 = vadd.f32 %v155, %v180
  %v182 = vpop.f32.mrf.mxu0
  %v183 = vadd.f32 %v155, %v182
  %184 = vdwg.mxu0
  %v185 = vadd.f32 %v33, %v181
  %v186 = vadd.f32 %v34, %v183
  %v187 = vsel %vm64, %v185, 0.0
  %188 = vadd.xlane.f32.xlu0 %v187
  %v189 = vpop.xlane.xlu0 %188
  %v190 = vsel %vm64, %v186, 0.0
  %191 = vadd.xlane.f32.xlu0 %v190
  %v192 = vpop.xlane.xlu0 %191
  %v193 = vrcp.pop 32.0
  %v194 = vmul.f32 32.0, %v193
  %v195 = vsub.f32 1.0, %v194
  %v196 = vmul.f32 %v193, %v195
  %v197 = vadd.f32 %v193, %v196
  %vm198 = vweird.f32 %v193
  %v199 = vsel %vm198, %v193, %v197
  %v200 = vmul.f32 %v189, %v199
  %v201 = vmul.f32 %v192, %v199
  %v202 = vmul.f32 %v185, %v185
  %v203 = vmul.f32 %v186, %v186
  %v204 = vsel %vm64, %v202, 0.0
  %205 = vadd.xlane.f32.xlu0 %v204
  %v206 = vpop.xlane.xlu0 %205
  %v207 = vsel %vm64, %v203, 0.0
  %208 = vadd.xlane.f32.xlu0 %v207
  %v209 = vpop.xlane.xlu0 %208
  %v210 = vmul.f32 %v206, %v199
  %v211 = vmul.f32 %v209, %v199
  %v212 = vmul.f32 %v200, %v200
  %v213 = vmul.f32 %v201, %v201
  %v214 = vsub.f32 %v210, %v212
  %v215 = vsub.f32 %v211, %v213
  %v216 = vsub.f32 %v185, %v200
  %v217 = vsub.f32 %v186, %v201
  %v218 = vadd.f32 %v214, 1e-12
  %v219 = vadd.f32 %v215, 1e-12
  %v220 = vrsqrt.pop %v218
  %v221 = vmul.f32 %v220, %v218
  %v222 = vmul.f32 %v221, %v220
  %v223 = vmul.f32 0.5, %v222
  %v224 = vsub.f32 1.5, %v223
  %v225 = vmul.f32 %v220, %v224
  %vm226 = vweird.f32 %v218
  %vm227 = vweird.f32 %v220
  %vm228 = vmor %vm226, %vm227
  %v229 = vsel %vm228, %v220, %v225
  %v230 = vrsqrt.pop %v219
  %v231 = vmul.f32 %v230, %v219
  %v232 = vmul.f32 %v231, %v230
  %v233 = vmul.f32 0.5, %v232
  %v234 = vsub.f32 1.5, %v233
  %v235 = vmul.f32 %v230, %v234
  %vm236 = vweird.f32 %v219
  %vm237 = vweird.f32 %v230
  %vm238 = vmor %vm236, %vm237
  %v239 = vsel %vm238, %v230, %v235
  %v240 = vmul.f32 %v216, %v229
  %v241 = vmul.f32 %v217, %v239
  %v242 = vperm.slane %v42, 0
  %v243 = vmul.f32 %v240, %v242
  %v244 = vmul.f32 %v241, %v242
  %v245 = vperm.slane %v43, 0
  %v246 = vadd.f32 %v243, %v245
  %v247 = vadd.f32 %v244, %v245
  %v248 = vpack.c.bf16 %v247, %v246
  %v249 = vld [vmem:[%s4] sm:$0xf]
  %v250 = vld [vmem:[%s4 + $0x4] sm:$0xf]
  %v251 = vld [vmem:[%s4 + $0x8] sm:$0xf]
  %v252 = vld [vmem:[%s4 + $0xc] sm:$0xf]
  %v253 = vperm.slane %v38, 0
  %v258 = vunpack.c.l.b16 %v249
  %v259 = vunpack.c.l.b16 %v250
  %v260 = vunpack.c.l.b16 %v251
  %v261 = vunpack.c.l.b16 %v252
  %v262 = vpack.c.b16 %v259, %v258
  %v263 = vpack.c.b16 %v261, %v260
  %v267 = vsel %vm64, %v248, 0
  %269 = vmatpush.bf16.msra.mxu0 0
  %270 = vmatpush.bf16.msra.mxu0 0
  %271 = vmatpush.bf16.msra.mxu0 0
  %272 = vmatpush.bf16.msra.mxu0 0
  %273 = vmatpush.bf16.msra.mxu0 0
  %274 = vmatpush.bf16.msra.mxu0 0
  %275 = vmatpush.bf16.msra.mxu0 %v263
  %276 = vmatpush.bf16.msra.mxu0 %v262
  %277 = vmatmul.bf16.gmra.mxu0 %v267
  %v278 = vpop.f32.mrf.mxu0
  %v279 = vadd.f32 %v253, %v278
  %v280 = vpop.f32.mrf.mxu0
  %v281 = vadd.f32 %v253, %v280
  %282 = vdwg.mxu0
  %v283 = vmul.f32 %v279, %v279
  %v284 = vmul.f32 %v281, %v281
  %v285 = vmul.f32 %v279, %v283
  %v286 = vmul.f32 %v281, %v284
  %v287 = vmul.f32 %v285, 0.044715
  %v288 = vmul.f32 %v286, 0.044715
  %v289 = vadd.f32 %v279, %v287
  %v290 = vadd.f32 %v281, %v288
  %v291 = vmul.f32 %v289, 0.7978846
  %v292 = vmul.f32 %v290, 0.7978846
  %v293 = vtanh.pop %v291
  %v294 = vtanh.pop %v292
  %v295 = vadd.f32 %v293, 1.0
  %v296 = vadd.f32 %v294, 1.0
  %v297 = vmul.f32 %v295, 0.5
  %v298 = vmul.f32 %v296, 0.5
  %v299 = vmul.f32 %v279, %v297
  %v300 = vmul.f32 %v281, %v298
  %v301 = vpack.c.bf16 %v300, %v299
  %v302 = vld [vmem:[%s5] sm:$0xf]
  %v303 = vld [vmem:[%s5 + $0x4] sm:$0xf]
  %v304 = vld [vmem:[%s5 + $0x8] sm:$0xf]
  %v305 = vld [vmem:[%s5 + $0xc] sm:$0xf]
  %v306 = vld [vmem:[%s5 + $0x10] sm:$0xf]
  %v307 = vld [vmem:[%s5 + $0x14] sm:$0xf]
  %v308 = vld [vmem:[%s5 + $0x18] sm:$0xf]
  %v309 = vld [vmem:[%s5 + $0x1c] sm:$0xf]
  %v310 = vld [vmem:[%s5 + $0x20] sm:$0xf]
  %v311 = vld [vmem:[%s5 + $0x24] sm:$0xf]
  %v312 = vld [vmem:[%s5 + $0x28] sm:$0xf]
  %v313 = vld [vmem:[%s5 + $0x2c] sm:$0xf]
  %v314 = vld [vmem:[%s5 + $0x30] sm:$0xf]
  %v315 = vld [vmem:[%s5 + $0x34] sm:$0xf]
  %v316 = vld [vmem:[%s5 + $0x38] sm:$0xf]
  %v317 = vld [vmem:[%s5 + $0x3c] sm:$0xf]
  %v318 = vperm.slane %v41, 0
  %v335 = vunpack.c.l.b16 %v302
  %v336 = vunpack.c.l.b16 %v303
  %v337 = vunpack.c.l.b16 %v304
  %v338 = vunpack.c.l.b16 %v305
  %v339 = vunpack.c.l.b16 %v306
  %v340 = vunpack.c.l.b16 %v307
  %v341 = vunpack.c.l.b16 %v308
  %v342 = vunpack.c.l.b16 %v309
  %v343 = vunpack.c.l.b16 %v310
  %v344 = vunpack.c.l.b16 %v311
  %v345 = vunpack.c.l.b16 %v312
  %v346 = vunpack.c.l.b16 %v313
  %v347 = vunpack.c.l.b16 %v314
  %v348 = vunpack.c.l.b16 %v315
  %v349 = vunpack.c.l.b16 %v316
  %v350 = vunpack.c.l.b16 %v317
  %v351 = vpack.c.b16 %v336, %v335
  %v352 = vpack.c.b16 %v338, %v337
  %v353 = vpack.c.b16 %v340, %v339
  %v354 = vpack.c.b16 %v342, %v341
  %v355 = vpack.c.b16 %v344, %v343
  %v356 = vpack.c.b16 %v346, %v345
  %v357 = vpack.c.b16 %v348, %v347
  %v358 = vpack.c.b16 %v350, %v349
  %367 = vmatpush.bf16.msra.mxu0 %v358
  %368 = vmatpush.bf16.msra.mxu0 %v357
  %369 = vmatpush.bf16.msra.mxu0 %v356
  %370 = vmatpush.bf16.msra.mxu0 %v355
  %371 = vmatpush.bf16.msra.mxu0 %v354
  %372 = vmatpush.bf16.msra.mxu0 %v353
  %373 = vmatpush.bf16.msra.mxu0 %v352
  %374 = vmatpush.bf16.msra.mxu0 %v351
  %375 = vmatmul.bf16.gmra.mxu0 %v301
  %v376 = vpop.f32.mrf.mxu0
  %v377 = vadd.f32 %v318, %v376
  %v378 = vpop.f32.mrf.mxu0
  %v379 = vadd.f32 %v318, %v378
  %380 = vdwg.mxu0
  %v381 = vadd.f32 %v246, %v377
  %v382 = vadd.f32 %v247, %v379
  %v383 = vsel %vm64, %v381, 0.0
  %384 = vadd.xlane.f32.xlu0 %v383
  %v385 = vpop.xlane.xlu0 %384
  %v386 = vsel %vm64, %v382, 0.0
  %387 = vadd.xlane.f32.xlu0 %v386
  %v388 = vpop.xlane.xlu0 %387
  %v389 = vmul.f32 %v385, %v199
  %v390 = vmul.f32 %v388, %v199
  %v391 = vmul.f32 %v381, %v381
  %v392 = vmul.f32 %v382, %v382
  %v393 = vsel %vm64, %v391, 0.0
  %394 = vadd.xlane.f32.xlu0 %v393
  %v395 = vpop.xlane.xlu0 %394
  %v396 = vsel %vm64, %v392, 0.0
  %397 = vadd.xlane.f32.xlu0 %v396
  %v398 = vpop.xlane.xlu0 %397
  %v399 = vmul.f32 %v395, %v199
  %v400 = vmul.f32 %v398, %v199
  %v401 = vmul.f32 %v389, %v389
  %v402 = vmul.f32 %v390, %v390
  %v403 = vsub.f32 %v399, %v401
  %v404 = vsub.f32 %v400, %v402
  %v405 = vsub.f32 %v381, %v389
  %v406 = vsub.f32 %v382, %v390
  %v407 = vadd.f32 %v403, 1e-12
  %v408 = vadd.f32 %v404, 1e-12
  %v409 = vrsqrt.pop %v407
  %v410 = vmul.f32 %v409, %v407
  %v411 = vmul.f32 %v410, %v409
  %v412 = vmul.f32 0.5, %v411
  %v413 = vsub.f32 1.5, %v412
  %v414 = vmul.f32 %v409, %v413
  %vm415 = vweird.f32 %v407
  %vm416 = vweird.f32 %v409
  %vm417 = vmor %vm415, %vm416
  %v418 = vsel %vm417, %v409, %v414
  %v419 = vrsqrt.pop %v408
  %v420 = vmul.f32 %v419, %v408
  %v421 = vmul.f32 %v420, %v419
  %v422 = vmul.f32 0.5, %v421
  %v423 = vsub.f32 1.5, %v422
  %v424 = vmul.f32 %v419, %v423
  %vm425 = vweird.f32 %v408
  %vm426 = vweird.f32 %v419
  %vm427 = vmor %vm425, %vm426
  %v428 = vsel %vm427, %v419, %v424
  %v429 = vmul.f32 %v405, %v418
  %v430 = vmul.f32 %v406, %v428
  %v431 = vperm.slane %v44, 0
  %v432 = vmul.f32 %v429, %v431
  %v433 = vmul.f32 %v430, %v431
  %v434 = vperm.slane %v45, 0
  %v435 = vadd.f32 %v432, %v434
  %v436 = vadd.f32 %v433, %v434
  %v437 = vpack.c.bf16 %v436, %v435
  %v438 = vld [vmem:[%s6] sm:$0xf]
  %v439 = vld [vmem:[%s6 + $0x4] sm:$0xf]
  %v440 = vld [vmem:[%s6 + $0x8] sm:$0xf]
  %v441 = vld [vmem:[%s6 + $0xc] sm:$0xf]
  %v442 = vperm.slane %v39, 0
  %v447 = vunpack.c.l.b16 %v438
  %v448 = vunpack.c.l.b16 %v439
  %v449 = vunpack.c.l.b16 %v440
  %v450 = vunpack.c.l.b16 %v441
  %v451 = vpack.c.b16 %v448, %v447
  %v452 = vpack.c.b16 %v450, %v449
  %v456 = vsel %vm64, %v437, 0
  %458 = vmatpush.bf16.msra.mxu0 0
  %459 = vmatpush.bf16.msra.mxu0 0
  %460 = vmatpush.bf16.msra.mxu0 0
  %461 = vmatpush.bf16.msra.mxu0 0
  %462 = vmatpush.bf16.msra.mxu0 0
  %463 = vmatpush.bf16.msra.mxu0 0
  %464 = vmatpush.bf16.msra.mxu0 %v452
  %465 = vmatpush.bf16.msra.mxu0 %v451
  %466 = vmatmul.bf16.gmra.mxu0 %v456
  %v467 = vpop.f32.mrf.mxu0
  %v468 = vadd.f32 %v442, %v467
  %v469 = vpop.f32.mrf.mxu0
  %v470 = vadd.f32 %v442, %v469
  %471 = vdwg.mxu0
  %472 = vst [vmem:[%s9] sm:$0xff] %v468
  %473 = vst [vmem:[%s9 + $0x8] sm:$0xff] %v470
  // Predicated region
  $region38: #{joint_causal_ie.1} parent=0 // pred_check
    _
  $region39: #{joint_causal_ie.1} parent=0 // pred_check_branch
    %475 = sbr.rel (0) target = $region41
  $region40: #{joint_causal_ie.1} parent=0 // pred_region
    _
  $region41: #{joint_causal_ie.1} parent=0 // pred_fallthru
    _
  // Predicated region
  $region42: #{joint_causal_ie.1} parent=0 // pred_check
    _
  $region43: #{joint_causal_ie.1} parent=0 // pred_check_branch
    %477 = sbr.rel (0) target = $region45
  $region44: #{joint_causal_ie.1} parent=0 // pred_region
    _
  $region45: #{joint_causal_ie.1} parent=0 // pred_fallthru
    _

</llo_original>
